<compile_context>
chip_gen: v5e
topology: v5e:2x2
jax: 0.10.0
libtpu: 0.0.40
codegen_flags: <defaults>
</compile_context>

<pallas_src>
import functools

import jax
import jax.numpy as jnp
from jax import lax
from jax.experimental import pallas as pl
from jax.experimental.pallas import tpu as pltpu

PREC = jax.lax.Precision.HIGHEST   # used only by the pure-JAX reference


# --------------------------------------------------------------------------
# Fused kernel: one image per grid step, channel-major (NCHW-native) layout.
#   x_ref : (Cin, H*W)  f32    input image (lane-dense, last dim = H*W)
#   s1/b1 : (Cin, 1)    f32    folded BN1 scale / bias (per-channel, sublanes)
#   w1    : (C1, Cin)   bf16   1x1 conv weight with BN2 scale folded in
#   b2    : (C1, 1)     f32    folded BN2 bias
#   w3    : (9, Cg, C1) bf16   3x3 taps, tap index = 3*dy + dx
#   o_ref : (Cout, H*W) f32    concat([conv_out, x], channel axis)
# --------------------------------------------------------------------------
def _su_block_kernel(x_ref, s1_ref, b1_ref, w1_ref, b2_ref, w3_ref, o_ref, *, W):
    Cin, HW = x_ref.shape
    C1 = w1_ref.shape[0]
    Cg = w3_ref.shape[1]

    x = x_ref[...]                                            # (Cin, HW) f32

    # ---- BN1 -> ReLU (per-channel scale/bias live on sublanes) ----
    h = jnp.maximum(x * s1_ref[...] + b1_ref[...], 0.0)       # (Cin, HW)

    # ---- 1x1 conv (BN2 scale pre-folded) -> +bias -> ReLU -> bf16 ----
    y = jnp.dot(w1_ref[...], h.astype(jnp.bfloat16),
                preferred_element_type=jnp.float32)           # (C1, HW) f32
    y = jnp.maximum(y + b2_ref[...], 0.0).astype(jnp.bfloat16)

    # ---- column-edge pre-masks (row edges are handled by the zero-filled
    #      flat shifts below; no halo scratch buffer is needed) ----
    col = jax.lax.broadcasted_iota(jnp.int32, (1, HW), 1) % W
    y_l = jnp.where(col == W - 1, jnp.zeros_like(y), y)       # for dx == 0 taps
    y_r = jnp.where(col == 0, jnp.zeros_like(y), y)           # for dx == 2 taps
    y_by_dx = (y_l, y, y_r)

    # ---- 3x3 "same" conv: 9 shifted (Cg, C1) @ (C1, HW) matmuls, f32 acc ----
    w3 = w3_ref[...]                                          # (9, Cg, C1) bf16
    acc = None
    for dy in range(3):
        for dx in range(3):
            off = (dy - 1) * W + (dx - 1)
            src = y_by_dx[dx]
            if off > 0:
                patch = jnp.concatenate(
                    [src[:, off:], jnp.zeros((C1, off), jnp.bfloat16)], axis=1)
            elif off < 0:
                patch = jnp.concatenate(
                    [jnp.zeros((C1, -off), jnp.bfloat16), src[:, :off]], axis=1)
            else:
                patch = src
            t = jnp.dot(w3[3 * dy + dx], patch,
                        preferred_element_type=jnp.float32)   # (Cg, HW)
            acc = t if acc is None else acc + t

    # ---- fused torch.cat((out, x), dim=1): two disjoint lane-dense stores ----
    o_ref[0:Cg, :] = acc
    o_ref[Cg:Cg + Cin, :] = x


def _fold_bn(gamma, beta, mean, var, eps=1e-5):
    scale = gamma / jnp.sqrt(var + eps)
    return scale, beta - mean * scale


def su_block_forward(x_nchw, params):
    """suBlock.forward (bNeck=True, dropout=0, eval-mode BN)."""
    N, Cin, H, W = x_nchw.shape
    w1 = params["w1"]                       # (C1, Cin, 1, 1) torch conv1 weight
    w3 = params["w3"]                       # (Cg, C1, 3, 3)  torch conv  weight
    C1, Cg = w1.shape[0], w3.shape[0]
    Cout = Cg + Cin
    HW = H * W

    s1, b1 = _fold_bn(params["g1"], params["be1"], params["m1"], params["v1"])
    s2, b2 = _fold_bn(params["g2"], params["be2"], params["m2"], params["v2"])

    # NCHW-native: a free reshape, no HBM relayout.
    x_cm = x_nchw.reshape(N, Cin, HW).astype(jnp.float32)

    # (C1, Cin) matmul operand with BN2 scale folded in (exact), cast to bf16.
    w1_mm = (w1[:, :, 0, 0] * s2[:, None]).astype(jnp.bfloat16)
    # 3x3 taps: (9, Cg, C1), tap index = 3*dy + dx, cast to bf16.
    w3_taps = jnp.transpose(w3, (2, 3, 0, 1)).reshape(9, Cg, C1).astype(jnp.bfloat16)

    kernel = functools.partial(_su_block_kernel, W=W)

    out_cm = pl.pallas_call(
        kernel,
        out_shape=jax.ShapeDtypeStruct((N, Cout, HW), jnp.float32),
        grid_spec=pltpu.PrefetchScalarGridSpec(
            num_scalar_prefetch=0,
            grid=(N,),
            in_specs=[
                pl.BlockSpec((None, Cin, HW), lambda n: (n, 0, 0)),
                pl.BlockSpec((Cin, 1), lambda n: (0, 0)),
                pl.BlockSpec((Cin, 1), lambda n: (0, 0)),
                pl.BlockSpec((C1, Cin), lambda n: (0, 0)),
                pl.BlockSpec((C1, 1), lambda n: (0, 0)),
                pl.BlockSpec((9, Cg, C1), lambda n: (0, 0, 0)),
            ],
            out_specs=pl.BlockSpec((None, Cout, HW), lambda n: (n, 0, 0)),
        ),
        compiler_params=pltpu.CompilerParams(
            dimension_semantics=("parallel",),
            vmem_limit_bytes=32 * 1024 * 1024),
    )(x_cm, s1.reshape(Cin, 1), b1.reshape(Cin, 1), w1_mm,
      b2.reshape(C1, 1), w3_taps)

    # (N, Cout, H*W) -> (N, Cout, H, W): free reshape, no transpose needed.
    return out_cm.reshape(N, Cout, H, W)


# --------------------------------------------------------------------------
# Pure-JAX f32 reference (same inference-mode semantics) for verification.
# --------------------------------------------------------------------------
def _reference_forward(x_nchw, params):
    def bn(x, g, b, m, v, eps=1e-5):
        s = g / jnp.sqrt(v + eps)
        return x * s[None, :, None, None] + (b - m * s)[None, :, None, None]

    dn = ("NCHW", "OIHW", "NCHW")
    h = jax.nn.relu(bn(x_nchw, params["g1"], params["be1"],
                       params["m1"], params["v1"]))
    y = lax.conv_general_dilated(h, params["w1"], (1, 1), "VALID",
                                 dimension_numbers=dn, precision=PREC)
    h2 = jax.nn.relu(bn(y, params["g2"], params["be2"],
                        params["m2"], params["v2"]))
    y2 = lax.conv_general_dilated(h2, params["w3"], (1, 1),
                                  ((1, 1), (1, 1)),
                                  dimension_numbers=dn, precision=PREC)
    return jnp.concatenate([y2, x_nchw], axis=1)


def _init_params(key, in_map, growth_rate):
    c1 = 4 * growth_rate
    ks = jax.random.split(key, 10)

    def nrm(k, shape, scale=0.1):
        return scale * jax.random.normal(k, shape, jnp.float32)

    return {
        "g1": 1.0 + nrm(ks[0], (in_map,)),
        "be1": nrm(ks[1], (in_map,)),
        "m1": nrm(ks[2], (in_map,)),
        "v1": 0.5 + jnp.abs(jax.random.normal(ks[3], (in_map,), jnp.float32)),
        "w1": nrm(ks[4], (c1, in_map, 1, 1), 0.3),
        "g2": 1.0 + nrm(ks[5], (c1,)),
        "be2": nrm(ks[6], (c1,)),
        "m2": nrm(ks[7], (c1,)),
        "v2": 0.5 + jnp.abs(jax.random.normal(ks[8], (c1,), jnp.float32)),
        "w3": nrm(ks[9], (growth_rate, c1, 3, 3), 0.3),
    }


if __name__ == "__main__":
    key = jax.random.PRNGKey(0)
    kx, kp = jax.random.split(key)

    N, in_map, H, W = 2, 4, 16, 16
    growth_rate = 12

    # TODO(synk): Dropout2d masks and training-mode (batch-statistic) BatchNorm
    # are not implemented; this reproduces the eval-mode forward with dropout=0.
    x = jax.random.normal(kx, (N, in_map, H, W), jnp.float32)
    params = _init_params(kp, in_map, growth_rate)

    fwd = jax.jit(su_block_forward)
    out = jax.block_until_ready(fwd(x, params))

    ref = _reference_forward(x, params)
    assert out.shape == (N, growth_rate + in_map, H, W), out.shape
    max_err = float(jnp.max(jnp.abs(out - ref)))
    # bf16 MXU inputs (f32 accumulate) vs. f32 reference -> loosened tolerance.
    assert jnp.allclose(out, ref, rtol=5e-2, atol=5e-2), max_err

    print("KERNEL_OK")
</pallas_src>

<mosaic_0001>
module attributes {stable_mosaic.version = 11 : i64} {
  func.func @_su_block_kernel(%arg0: i32, %arg1: memref<1x4x256xf32, #tpu.memory_space<vmem>>, %arg2: memref<4x1xf32, #tpu.memory_space<vmem>>, %arg3: memref<4x1xf32, #tpu.memory_space<vmem>>, %arg4: memref<48x4xbf16, #tpu.memory_space<vmem>>, %arg5: memref<48x1xf32, #tpu.memory_space<vmem>>, %arg6: memref<9x12x48xbf16, #tpu.memory_space<vmem>>, %arg7: memref<1x16x256xf32, #tpu.memory_space<vmem>>) attributes {dimension_semantics = [#tpu.dimension_semantics<parallel>], iteration_bounds = array<i64: 2>, scalar_prefetch = 0 : i64, scratch_operands = 0 : i64, tpu.core_type = #tpu.core_type<tc>, window_params = [{transform_indices = @transform_0, window_bounds = array<i64: 1, 4, 256>}, {pipeline_mode = #tpu.pipeline_mode<synchronous>, transform_indices = @transform_1, window_bounds = array<i64: 4, 1>}, {pipeline_mode = #tpu.pipeline_mode<synchronous>, transform_indices = @transform_2, window_bounds = array<i64: 4, 1>}, {pipeline_mode = #tpu.pipeline_mode<synchronous>, transform_indices = @transform_3, window_bounds = array<i64: 48, 4>}, {pipeline_mode = #tpu.pipeline_mode<synchronous>, transform_indices = @transform_4, window_bounds = array<i64: 48, 1>}, {pipeline_mode = #tpu.pipeline_mode<synchronous>, transform_indices = @transform_5, window_bounds = array<i64: 9, 12, 48>}, {transform_indices = @transform_6, window_bounds = array<i64: 1, 16, 256>}]} {
    %c0 = arith.constant 0 : index
    %c0_0 = arith.constant 0 : index
    %c0_1 = arith.constant 0 : index
    %0 = vector.load %arg1[%c0, %c0_0, %c0_1] : memref<1x4x256xf32, #tpu.memory_space<vmem>>, vector<1x4x256xf32>
    %1 = vector.shape_cast %0 : vector<1x4x256xf32> to vector<4x256xf32>
    %c0_2 = arith.constant 0 : index
    %c0_3 = arith.constant 0 : index
    %2 = vector.load %arg2[%c0_2, %c0_3] : memref<4x1xf32, #tpu.memory_space<vmem>>, vector<4x1xf32>
    %3 = vector.broadcast %2 : vector<4x1xf32> to vector<4x256xf32>
    %4 = arith.mulf %1, %3 : vector<4x256xf32>
    %c0_4 = arith.constant 0 : index
    %c0_5 = arith.constant 0 : index
    %5 = vector.load %arg3[%c0_4, %c0_5] : memref<4x1xf32, #tpu.memory_space<vmem>>, vector<4x1xf32>
    %6 = vector.broadcast %5 : vector<4x1xf32> to vector<4x256xf32>
    %7 = arith.addf %4, %6 : vector<4x256xf32>
    %cst = arith.constant 0.000000e+00 : f32
    %8 = vector.broadcast %cst : f32 to vector<4x256xf32>
    %9 = arith.maximumf %7, %8 : vector<4x256xf32>
    %c0_6 = arith.constant 0 : index
    %c0_7 = arith.constant 0 : index
    %10 = vector.load %arg4[%c0_6, %c0_7] : memref<48x4xbf16, #tpu.memory_space<vmem>>, vector<48x4xbf16>
    %11 = arith.truncf %9 : vector<4x256xf32> to vector<4x256xbf16>
    %cst_8 = arith.constant dense<0.000000e+00> : vector<48x256xf32>
    %12 = tpu.matmul %10, %11, %cst_8 {dimension_numbers = #tpu.dot_dimension_numbers<[1], [0], [0], [1], [0, 0, 1, 1], [], []>} : vector<48x4xbf16>, vector<4x256xbf16>, vector<48x256xf32> -> vector<48x256xf32>
    %c0_9 = arith.constant 0 : index
    %c0_10 = arith.constant 0 : index
    %13 = vector.load %arg5[%c0_9, %c0_10] : memref<48x1xf32, #tpu.memory_space<vmem>>, vector<48x1xf32>
    %14 = vector.broadcast %13 : vector<48x1xf32> to vector<48x256xf32>
    %15 = arith.addf %12, %14 : vector<48x256xf32>
    %cst_11 = arith.constant 0.000000e+00 : f32
    %16 = vector.broadcast %cst_11 : f32 to vector<48x256xf32>
    %17 = arith.maximumf %15, %16 : vector<48x256xf32>
    %18 = arith.truncf %17 : vector<48x256xf32> to vector<48x256xbf16>
    %19 = tpu.iota {dimensions = array<i32: 1>} : vector<1x256xi32>
    %c16_i32 = arith.constant 16 : i32
    %c0_i32 = arith.constant 0 : i32
    %20 = arith.cmpi eq, %c16_i32, %c0_i32 : i32
    %c1_i32 = arith.constant 1 : i32
    %21 = arith.select %20, %c1_i32, %c16_i32 : i32
    %22 = vector.broadcast %21 : i32 to vector<1x256xi32>
    %23 = arith.remsi %19, %22 : vector<1x256xi32>
    %c0_i32_12 = arith.constant 0 : i32
    %24 = vector.broadcast %c0_i32_12 : i32 to vector<1x256xi32>
    %25 = arith.cmpi ne, %23, %24 : vector<1x256xi32>
    %c0_i32_13 = arith.constant 0 : i32
    %26 = vector.broadcast %c0_i32_13 : i32 to vector<1x256xi32>
    %27 = arith.cmpi slt, %23, %26 : vector<1x256xi32>
    %c0_i32_14 = arith.constant 0 : i32
    %28 = arith.cmpi slt, %21, %c0_i32_14 : i32
    %29 = vector.broadcast %28 : i1 to vector<1x256xi1>
    %30 = vector.broadcast %29 : vector<1x256xi1> to vector<1x256xi1>
    %31 = arith.xori %27, %30 : vector<1x256xi1>
    %32 = arith.andi %31, %25 : vector<1x256xi1>
    %33 = vector.broadcast %21 : i32 to vector<1x256xi32>
    %34 = arith.addi %23, %33 : vector<1x256xi32>
    %35 = arith.select %32, %34, %23 : vector<1x256xi1>, vector<1x256xi32>
    %c15_i32 = arith.constant 15 : i32
    %36 = vector.broadcast %c15_i32 : i32 to vector<1x256xi32>
    %37 = arith.cmpi eq, %35, %36 : vector<1x256xi32>
    %cst_15 = arith.constant 0.000000e+00 : bf16
    %38 = vector.broadcast %cst_15 : bf16 to vector<48x256xbf16>
    %39 = vector.shape_cast %37 : vector<1x256xi1> to vector<1x256xi1>
    %40 = vector.broadcast %39 : vector<1x256xi1> to vector<48x256xi1>
    %41 = arith.select %40, %38, %18 : vector<48x256xi1>, vector<48x256xbf16>
    %c0_i32_16 = arith.constant 0 : i32
    %42 = vector.broadcast %c0_i32_16 : i32 to vector<1x256xi32>
    %43 = arith.cmpi eq, %35, %42 : vector<1x256xi32>
    %cst_17 = arith.constant 0.000000e+00 : bf16
    %44 = vector.broadcast %cst_17 : bf16 to vector<48x256xbf16>
    %45 = vector.shape_cast %43 : vector<1x256xi1> to vector<1x256xi1>
    %46 = vector.broadcast %45 : vector<1x256xi1> to vector<48x256xi1>
    %47 = arith.select %46, %44, %18 : vector<48x256xi1>, vector<48x256xbf16>
    %c0_18 = arith.constant 0 : index
    %c0_19 = arith.constant 0 : index
    %c0_20 = arith.constant 0 : index
    %48 = vector.load %arg6[%c0_18, %c0_19, %c0_20] : memref<9x12x48xbf16, #tpu.memory_space<vmem>>, vector<9x12x48xbf16>
    %cst_21 = arith.constant 0.000000e+00 : bf16
    %49 = vector.broadcast %cst_21 : bf16 to vector<48x17xbf16>
    %50 = vector.extract_strided_slice %41 {offsets = [0, 0], sizes = [48, 239], strides = [1, 1]} : vector<48x256xbf16> to vector<48x239xbf16>
    %51 = tpu.concatenate %49, %50 in 1 : vector<48x17xbf16>, vector<48x239xbf16> -> vector<48x256xbf16>
    %52 = vector.extract_strided_slice %48 {offsets = [0, 0, 0], sizes = [1, 12, 48], strides = [1, 1, 1]} : vector<9x12x48xbf16> to vector<1x12x48xbf16>
    %53 = vector.shape_cast %52 : vector<1x12x48xbf16> to vector<12x48xbf16>
    %cst_22 = arith.constant dense<0.000000e+00> : vector<12x256xf32>
    %54 = tpu.matmul %53, %51, %cst_22 {dimension_numbers = #tpu.dot_dimension_numbers<[1], [0], [0], [1], [0, 0, 1, 1], [], []>} : vector<12x48xbf16>, vector<48x256xbf16>, vector<12x256xf32> -> vector<12x256xf32>
    %cst_23 = arith.constant 0.000000e+00 : bf16
    %55 = vector.broadcast %cst_23 : bf16 to vector<48x16xbf16>
    %56 = vector.extract_strided_slice %18 {offsets = [0, 0], sizes = [48, 240], strides = [1, 1]} : vector<48x256xbf16> to vector<48x240xbf16>
    %57 = tpu.concatenate %55, %56 in 1 : vector<48x16xbf16>, vector<48x240xbf16> -> vector<48x256xbf16>
    %58 = vector.extract_strided_slice %48 {offsets = [1, 0, 0], sizes = [1, 12, 48], strides = [1, 1, 1]} : vector<9x12x48xbf16> to vector<1x12x48xbf16>
    %59 = vector.shape_cast %58 : vector<1x12x48xbf16> to vector<12x48xbf16>
    %cst_24 = arith.constant dense<0.000000e+00> : vector<12x256xf32>
    %60 = tpu.matmul %59, %57, %cst_24 {dimension_numbers = #tpu.dot_dimension_numbers<[1], [0], [0], [1], [0, 0, 1, 1], [], []>} : vector<12x48xbf16>, vector<48x256xbf16>, vector<12x256xf32> -> vector<12x256xf32>
    %61 = arith.addf %54, %60 : vector<12x256xf32>
    %cst_25 = arith.constant 0.000000e+00 : bf16
    %62 = vector.broadcast %cst_25 : bf16 to vector<48x15xbf16>
    %63 = vector.extract_strided_slice %47 {offsets = [0, 0], sizes = [48, 241], strides = [1, 1]} : vector<48x256xbf16> to vector<48x241xbf16>
    %64 = tpu.concatenate %62, %63 in 1 : vector<48x15xbf16>, vector<48x241xbf16> -> vector<48x256xbf16>
    %65 = vector.extract_strided_slice %48 {offsets = [2, 0, 0], sizes = [1, 12, 48], strides = [1, 1, 1]} : vector<9x12x48xbf16> to vector<1x12x48xbf16>
    %66 = vector.shape_cast %65 : vector<1x12x48xbf16> to vector<12x48xbf16>
    %cst_26 = arith.constant dense<0.000000e+00> : vector<12x256xf32>
    %67 = tpu.matmul %66, %64, %cst_26 {dimension_numbers = #tpu.dot_dimension_numbers<[1], [0], [0], [1], [0, 0, 1, 1], [], []>} : vector<12x48xbf16>, vector<48x256xbf16>, vector<12x256xf32> -> vector<12x256xf32>
    %68 = arith.addf %61, %67 : vector<12x256xf32>
    %cst_27 = arith.constant 0.000000e+00 : bf16
    %69 = vector.broadcast %cst_27 : bf16 to vector<48x1xbf16>
    %70 = vector.extract_strided_slice %41 {offsets = [0, 0], sizes = [48, 255], strides = [1, 1]} : vector<48x256xbf16> to vector<48x255xbf16>
    %71 = tpu.concatenate %69, %70 in 1 : vector<48x1xbf16>, vector<48x255xbf16> -> vector<48x256xbf16>
    %72 = vector.extract_strided_slice %48 {offsets = [3, 0, 0], sizes = [1, 12, 48], strides = [1, 1, 1]} : vector<9x12x48xbf16> to vector<1x12x48xbf16>
    %73 = vector.shape_cast %72 : vector<1x12x48xbf16> to vector<12x48xbf16>
    %cst_28 = arith.constant dense<0.000000e+00> : vector<12x256xf32>
    %74 = tpu.matmul %73, %71, %cst_28 {dimension_numbers = #tpu.dot_dimension_numbers<[1], [0], [0], [1], [0, 0, 1, 1], [], []>} : vector<12x48xbf16>, vector<48x256xbf16>, vector<12x256xf32> -> vector<12x256xf32>
    %75 = arith.addf %68, %74 : vector<12x256xf32>
    %76 = vector.extract_strided_slice %48 {offsets = [4, 0, 0], sizes = [1, 12, 48], strides = [1, 1, 1]} : vector<9x12x48xbf16> to vector<1x12x48xbf16>
    %77 = vector.shape_cast %76 : vector<1x12x48xbf16> to vector<12x48xbf16>
    %cst_29 = arith.constant dense<0.000000e+00> : vector<12x256xf32>
    %78 = tpu.matmul %77, %18, %cst_29 {dimension_numbers = #tpu.dot_dimension_numbers<[1], [0], [0], [1], [0, 0, 1, 1], [], []>} : vector<12x48xbf16>, vector<48x256xbf16>, vector<12x256xf32> -> vector<12x256xf32>
    %79 = arith.addf %75, %78 : vector<12x256xf32>
    %80 = vector.extract_strided_slice %47 {offsets = [0, 1], sizes = [48, 255], strides = [1, 1]} : vector<48x256xbf16> to vector<48x255xbf16>
    %cst_30 = arith.constant 0.000000e+00 : bf16
    %81 = vector.broadcast %cst_30 : bf16 to vector<48x1xbf16>
    %82 = tpu.concatenate %80, %81 in 1 : vector<48x255xbf16>, vector<48x1xbf16> -> vector<48x256xbf16>
    %83 = vector.extract_strided_slice %48 {offsets = [5, 0, 0], sizes = [1, 12, 48], strides = [1, 1, 1]} : vector<9x12x48xbf16> to vector<1x12x48xbf16>
    %84 = vector.shape_cast %83 : vector<1x12x48xbf16> to vector<12x48xbf16>
    %cst_31 = arith.constant dense<0.000000e+00> : vector<12x256xf32>
    %85 = tpu.matmul %84, %82, %cst_31 {dimension_numbers = #tpu.dot_dimension_numbers<[1], [0], [0], [1], [0, 0, 1, 1], [], []>} : vector<12x48xbf16>, vector<48x256xbf16>, vector<12x256xf32> -> vector<12x256xf32>
    %86 = arith.addf %79, %85 : vector<12x256xf32>
    %87 = vector.extract_strided_slice %41 {offsets = [0, 15], sizes = [48, 241], strides = [1, 1]} : vector<48x256xbf16> to vector<48x241xbf16>
    %cst_32 = arith.constant 0.000000e+00 : bf16
    %88 = vector.broadcast %cst_32 : bf16 to vector<48x15xbf16>
    %89 = tpu.concatenate %87, %88 in 1 : vector<48x241xbf16>, vector<48x15xbf16> -> vector<48x256xbf16>
    %90 = vector.extract_strided_slice %48 {offsets = [6, 0, 0], sizes = [1, 12, 48], strides = [1, 1, 1]} : vector<9x12x48xbf16> to vector<1x12x48xbf16>
    %91 = vector.shape_cast %90 : vector<1x12x48xbf16> to vector<12x48xbf16>
    %cst_33 = arith.constant dense<0.000000e+00> : vector<12x256xf32>
    %92 = tpu.matmul %91, %89, %cst_33 {dimension_numbers = #tpu.dot_dimension_numbers<[1], [0], [0], [1], [0, 0, 1, 1], [], []>} : vector<12x48xbf16>, vector<48x256xbf16>, vector<12x256xf32> -> vector<12x256xf32>
    %93 = arith.addf %86, %92 : vector<12x256xf32>
    %94 = vector.extract_strided_slice %18 {offsets = [0, 16], sizes = [48, 240], strides = [1, 1]} : vector<48x256xbf16> to vector<48x240xbf16>
    %cst_34 = arith.constant 0.000000e+00 : bf16
    %95 = vector.broadcast %cst_34 : bf16 to vector<48x16xbf16>
    %96 = tpu.concatenate %94, %95 in 1 : vector<48x240xbf16>, vector<48x16xbf16> -> vector<48x256xbf16>
    %97 = vector.extract_strided_slice %48 {offsets = [7, 0, 0], sizes = [1, 12, 48], strides = [1, 1, 1]} : vector<9x12x48xbf16> to vector<1x12x48xbf16>
    %98 = vector.shape_cast %97 : vector<1x12x48xbf16> to vector<12x48xbf16>
    %cst_35 = arith.constant dense<0.000000e+00> : vector<12x256xf32>
    %99 = tpu.matmul %98, %96, %cst_35 {dimension_numbers = #tpu.dot_dimension_numbers<[1], [0], [0], [1], [0, 0, 1, 1], [], []>} : vector<12x48xbf16>, vector<48x256xbf16>, vector<12x256xf32> -> vector<12x256xf32>
    %100 = arith.addf %93, %99 : vector<12x256xf32>
    %101 = vector.extract_strided_slice %47 {offsets = [0, 17], sizes = [48, 239], strides = [1, 1]} : vector<48x256xbf16> to vector<48x239xbf16>
    %cst_36 = arith.constant 0.000000e+00 : bf16
    %102 = vector.broadcast %cst_36 : bf16 to vector<48x17xbf16>
    %103 = tpu.concatenate %101, %102 in 1 : vector<48x239xbf16>, vector<48x17xbf16> -> vector<48x256xbf16>
    %104 = vector.extract_strided_slice %48 {offsets = [8, 0, 0], sizes = [1, 12, 48], strides = [1, 1, 1]} : vector<9x12x48xbf16> to vector<1x12x48xbf16>
    %105 = vector.shape_cast %104 : vector<1x12x48xbf16> to vector<12x48xbf16>
    %cst_37 = arith.constant dense<0.000000e+00> : vector<12x256xf32>
    %106 = tpu.matmul %105, %103, %cst_37 {dimension_numbers = #tpu.dot_dimension_numbers<[1], [0], [0], [1], [0, 0, 1, 1], [], []>} : vector<12x48xbf16>, vector<48x256xbf16>, vector<12x256xf32> -> vector<12x256xf32>
    %107 = arith.addf %100, %106 : vector<12x256xf32>
    %c0_38 = arith.constant 0 : index
    %c0_39 = arith.constant 0 : index
    %c0_40 = arith.constant 0 : index
    %108 = vector.load %arg7[%c0_38, %c0_39, %c0_40] : memref<1x16x256xf32, #tpu.memory_space<vmem>>, vector<1x12x256xf32>
    %109 = vector.shape_cast %108 : vector<1x12x256xf32> to vector<12x256xf32>
    %110 = vector.shape_cast %107 : vector<12x256xf32> to vector<1x12x256xf32>
    tpu.vector_store %arg7[%c0_38, %c0_39, %c0_40], %110 {strides = array<i32>} : memref<1x16x256xf32, #tpu.memory_space<vmem>>, vector<1x12x256xf32>,
    %c0_41 = arith.constant 0 : index
    %c12 = arith.constant 12 : index
    %c0_42 = arith.constant 0 : index
    %111 = vector.load %arg7[%c0_41, %c12, %c0_42] : memref<1x16x256xf32, #tpu.memory_space<vmem>>, vector<1x4x256xf32>
    %112 = vector.shape_cast %111 : vector<1x4x256xf32> to vector<4x256xf32>
    %113 = vector.shape_cast %1 : vector<4x256xf32> to vector<1x4x256xf32>
    tpu.vector_store %arg7[%c0_41, %c12, %c0_42], %113 {strides = array<i32>} : memref<1x16x256xf32, #tpu.memory_space<vmem>>, vector<1x4x256xf32>,
    return
  }
  func.func @transform_0(%arg0: i32) -> (i32, i32, i32) {
    %c0_i32 = arith.constant 0 : i32
    %c0_i32_0 = arith.constant 0 : i32
    %c0_i32_1 = arith.constant 0 : i32
    return %arg0, %c0_i32, %c0_i32_0 : i32, i32, i32
  }
  func.func @transform_1(%arg0: i32) -> (i32, i32) {
    %c0_i32 = arith.constant 0 : i32
    %c0_i32_0 = arith.constant 0 : i32
    %c0_i32_1 = arith.constant 0 : i32
    return %c0_i32, %c0_i32_0 : i32, i32
  }
  func.func @transform_2(%arg0: i32) -> (i32, i32) {
    %c0_i32 = arith.constant 0 : i32
    %c0_i32_0 = arith.constant 0 : i32
    %c0_i32_1 = arith.constant 0 : i32
    return %c0_i32, %c0_i32_0 : i32, i32
  }
  func.func @transform_3(%arg0: i32) -> (i32, i32) {
    %c0_i32 = arith.constant 0 : i32
    %c0_i32_0 = arith.constant 0 : i32
    %c0_i32_1 = arith.constant 0 : i32
    return %c0_i32, %c0_i32_0 : i32, i32
  }
  func.func @transform_4(%arg0: i32) -> (i32, i32) {
    %c0_i32 = arith.constant 0 : i32
    %c0_i32_0 = arith.constant 0 : i32
    %c0_i32_1 = arith.constant 0 : i32
    return %c0_i32, %c0_i32_0 : i32, i32
  }
  func.func @transform_5(%arg0: i32) -> (i32, i32, i32) {
    %c0_i32 = arith.constant 0 : i32
    %c0_i32_0 = arith.constant 0 : i32
    %c0_i32_1 = arith.constant 0 : i32
    %c0_i32_2 = arith.constant 0 : i32
    return %c0_i32, %c0_i32_0, %c0_i32_1 : i32, i32, i32
  }
  func.func @transform_6(%arg0: i32) -> (i32, i32, i32) {
    %c0_i32 = arith.constant 0 : i32
    %c0_i32_0 = arith.constant 0 : i32
    %c0_i32_1 = arith.constant 0 : i32
    return %arg0, %c0_i32, %c0_i32_0 : i32, i32, i32
  }
}

</mosaic_0001>

<llo_original>
// kernel: su_block_forward.1
$region0: #{su_block_forward.1}
  #allocation0 [shape = 'u32[]', space=smem, size = 0x4, offset = 0x4, fixed_abs, tag = 'smem constant byte address 0x4 - core index']
  #allocation1 [shape = 'u32[72,128]{1,0:T(1,128)}', space=vmem, size = 0x9000, scoped, tag = 'internal scratch']
  %s0 = inlined_call_operand.vmem [shape: f32[2,4,256], index: 0, kind: input, shape index: {}]
  %s1 = inlined_call_operand.vmem [shape: f32[4,1], index: 1, kind: input, shape index: {}]
  %s2 = inlined_call_operand.vmem [shape: f32[4,1], index: 2, kind: input, shape index: {}]
  %s3 = inlined_call_operand.vmem [shape: bf16[48,4], index: 3, kind: input, shape index: {}]
  %s4 = inlined_call_operand.vmem [shape: f32[48,1], index: 4, kind: input, shape index: {}]
  %s5 = inlined_call_operand.vmem [shape: bf16[9,12,48], index: 5, kind: input, shape index: {}]
  %s6 = inlined_call_operand.vmem [shape: f32[2,16,256], index: 6, kind: output, shape index: {}]
  %s7 = sld [smem:[#allocation0]]
  $region57: #{su_block_forward.1} parent=0
    _
  %s9 = ssub.s32 1, %s7
  %s10 = scalar_select 0, %s9, %s7
  loop: start=0, step=1, limit=4
  $region2: #{su_block_forward.1} parent=0 // loop_pre_header
    _
  $region3: #{su_block_forward.1} parent=0 // loop_header
    %s12 = sphi 0, %s16
    %p13 = scmp.ge.s32.totalorder %s12, 4
    %s22 = sphi 0, %s24
    %s25 = sphi 0, %s22
    %s26 = sphi 0, %s25
    %s42 = sphi 0, %s26
    %s46 = sphi 0, %s46
    %s48 = sphi 0, %s46
    %s49 = sphi 0, %s48
    %s63 = sphi 0, %s49
    %s67 = sphi 0, %s67
    %s69 = sphi 0, %s67
    %s70 = sphi 0, %s69
    %s84 = sphi 0, %s70
    %s88 = sphi 0, %s88
    %s90 = sphi 0, %s88
    %s91 = sphi 0, %s90
    %s105 = sphi 0, %s91
    %s109 = sphi 0, %s109
    %s111 = sphi 0, %s109
    %s112 = sphi 0, %s111
    %s126 = sphi 0, %s112
    %s130 = sphi 0, %s130
    %s132 = sphi 0, %s130
    %s133 = sphi 0, %s132
    %s147 = sphi 0, %s133
    %s153 = sphi 0, %s155
    %s156 = sphi 0, %s153
    %s157 = sphi 0, %s156
    %s173 = sphi 0, %s157
  $region4: #{su_block_forward.1} parent=0 // loop_header_branch
    %15 = sbr.rel (%p13) target = $region8
  $region5: #{su_block_forward.1} parent=0 // loop_body
    %s17 = ssub.s32 %s12, 1
    %s18 = ssub.s32 %s12, 2
    %s19 = sadd.s32 %s12, 1
    %s20 = ssub.s32 %s12, %s19
    %p21 = scmp.eq.s32.totalorder %s20, 0
    %s23 = sadd.s32 %s22, 1
    %s24 = scalar_select %p21, %s22, %s23
    %p27 = pneg %p21
    %p28 = scmp.eq.s32.totalorder %s12, 1
    %p29 = por %p27, %p28
    %p30 = scmp.ne.s32.totalorder %s22, %s25
    %p31 = scmp.eq.s32.totalorder %s12, 0
    %p32 = por %p30, %p31
    %p33 = scmp.ne.s32.totalorder %s22, %s25
    %p34 = scmp.eq.s32.totalorder %s17, 1
    %p35 = por %p33, %p34
    %p36 = scmp.ne.s32.totalorder %s25, %s26
    %p37 = scmp.eq.s32.totalorder %s17, 0
    %p38 = por %p36, %p37
    %p39 = scmp.ne.s32.totalorder %s25, %s26
    %p40 = scmp.eq.s32.totalorder %s18, 1
    %p41 = por %p39, %p40
    %p43 = scmp.ne.s32.totalorder %s26, %s42
    %p44 = scmp.eq.s32.totalorder %s18, 0
    %p45 = por %p43, %p44
    %s47 = sadd.s32 %s46, 1
    %p50 = scmp.eq.s32.totalorder %s12, 1
    %p51 = scmp.ne.s32.totalorder %s46, %s48
    %p52 = scmp.eq.s32.totalorder %s12, 0
    %p53 = por %p51, %p52
    %p54 = scmp.ne.s32.totalorder %s46, %s48
    %p55 = scmp.eq.s32.totalorder %s17, 1
    %p56 = por %p54, %p55
    %p57 = scmp.ne.s32.totalorder %s48, %s49
    %p58 = scmp.eq.s32.totalorder %s17, 0
    %p59 = por %p57, %p58
    %p60 = scmp.ne.s32.totalorder %s48, %s49
    %p61 = scmp.eq.s32.totalorder %s18, 1
    %p62 = por %p60, %p61
    %p64 = scmp.ne.s32.totalorder %s49, %s63
    %p65 = scmp.eq.s32.totalorder %s18, 0
    %p66 = por %p64, %p65
    %s68 = sadd.s32 %s67, 1
    %p71 = scmp.eq.s32.totalorder %s12, 1
    %p72 = scmp.ne.s32.totalorder %s67, %s69
    %p73 = scmp.eq.s32.totalorder %s12, 0
    %p74 = por %p72, %p73
    %p75 = scmp.ne.s32.totalorder %s67, %s69
    %p76 = scmp.eq.s32.totalorder %s17, 1
    %p77 = por %p75, %p76
    %p78 = scmp.ne.s32.totalorder %s69, %s70
    %p79 = scmp.eq.s32.totalorder %s17, 0
    %p80 = por %p78, %p79
    %p81 = scmp.ne.s32.totalorder %s69, %s70
    %p82 = scmp.eq.s32.totalorder %s18, 1
    %p83 = por %p81, %p82
    %p85 = scmp.ne.s32.totalorder %s70, %s84
    %p86 = scmp.eq.s32.totalorder %s18, 0
    %p87 = por %p85, %p86
    %s89 = sadd.s32 %s88, 1
    %p92 = scmp.eq.s32.totalorder %s12, 1
    %p93 = scmp.ne.s32.totalorder %s88, %s90
    %p94 = scmp.eq.s32.totalorder %s12, 0
    %p95 = por %p93, %p94
    %p96 = scmp.ne.s32.totalorder %s88, %s90
    %p97 = scmp.eq.s32.totalorder %s17, 1
    %p98 = por %p96, %p97
    %p99 = scmp.ne.s32.totalorder %s90, %s91
    %p100 = scmp.eq.s32.totalorder %s17, 0
    %p101 = por %p99, %p100
    %p102 = scmp.ne.s32.totalorder %s90, %s91
    %p103 = scmp.eq.s32.totalorder %s18, 1
    %p104 = por %p102, %p103
    %p106 = scmp.ne.s32.totalorder %s91, %s105
    %p107 = scmp.eq.s32.totalorder %s18, 0
    %p108 = por %p106, %p107
    %s110 = sadd.s32 %s109, 1
    %p113 = scmp.eq.s32.totalorder %s12, 1
    %p114 = scmp.ne.s32.totalorder %s109, %s111
    %p115 = scmp.eq.s32.totalorder %s12, 0
    %p116 = por %p114, %p115
    %p117 = scmp.ne.s32.totalorder %s109, %s111
    %p118 = scmp.eq.s32.totalorder %s17, 1
    %p119 = por %p117, %p118
    %p120 = scmp.ne.s32.totalorder %s111, %s112
    %p121 = scmp.eq.s32.totalorder %s17, 0
    %p122 = por %p120, %p121
    %p123 = scmp.ne.s32.totalorder %s111, %s112
    %p124 = scmp.eq.s32.totalorder %s18, 1
    %p125 = por %p123, %p124
    %p127 = scmp.ne.s32.totalorder %s112, %s126
    %p128 = scmp.eq.s32.totalorder %s18, 0
    %p129 = por %p127, %p128
    %s131 = sadd.s32 %s130, 1
    %p134 = scmp.eq.s32.totalorder %s12, 1
    %p135 = scmp.ne.s32.totalorder %s130, %s132
    %p136 = scmp.eq.s32.totalorder %s12, 0
    %p137 = por %p135, %p136
    %p138 = scmp.ne.s32.totalorder %s130, %s132
    %p139 = scmp.eq.s32.totalorder %s17, 1
    %p140 = por %p138, %p139
    %p141 = scmp.ne.s32.totalorder %s132, %s133
    %p142 = scmp.eq.s32.totalorder %s17, 0
    %p143 = por %p141, %p142
    %p144 = scmp.ne.s32.totalorder %s132, %s133
    %p145 = scmp.eq.s32.totalorder %s18, 1
    %p146 = por %p144, %p145
    %p148 = scmp.ne.s32.totalorder %s133, %s147
    %p149 = scmp.eq.s32.totalorder %s18, 0
    %p150 = por %p148, %p149
    %s151 = ssub.s32 %s12, %s19
    %p152 = scmp.eq.s32.totalorder %s151, 0
    %s154 = sadd.s32 %s153, 1
    %s155 = scalar_select %p152, %s153, %s154
    %p158 = pneg %p152
    %p159 = scmp.eq.s32.totalorder %s12, 1
    %p160 = por %p158, %p159
    %p161 = scmp.ne.s32.totalorder %s153, %s156
    %p162 = scmp.eq.s32.totalorder %s12, 0
    %p163 = por %p161, %p162
    %p164 = scmp.ne.s32.totalorder %s153, %s156
    %p165 = scmp.eq.s32.totalorder %s17, 1
    %p166 = por %p164, %p165
    %p167 = scmp.ne.s32.totalorder %s156, %s157
    %p168 = scmp.eq.s32.totalorder %s17, 0
    %p169 = por %p167, %p168
    %p170 = scmp.ne.s32.totalorder %s156, %s157
    %p171 = scmp.eq.s32.totalorder %s18, 1
    %p172 = por %p170, %p171
    %p174 = scmp.ne.s32.totalorder %s157, %s173
    %p175 = scmp.eq.s32.totalorder %s18, 0
    %p176 = por %p174, %p175
    %p177 = scmp.le.s32.totalorder 1, %s12
    %p178 = scmp.lt.s32.totalorder %s12, 3
    %p179 = pnand %p177, %p178
    %p180 = pneg %p179
    // Predicated region
    $region9: #{su_block_forward.1} parent=5 // pred_check
      _
    $region10: #{su_block_forward.1} parent=5 // pred_check_branch
      %182 = sbr.rel (%p179) target = $region12
    $region11: #{su_block_forward.1} parent=5 // pred_region
      %s183 = ssub.s32 %s12, 1
      // Predicated region
      $region13: #{su_block_forward.1} parent=11 // pred_check
        %p184 = pneg %p59
      $region14: #{su_block_forward.1} parent=11 // pred_check_branch
        %186 = sbr.rel (%p184) target = $region16
      $region15: #{su_block_forward.1} parent=11 // pred_region
        _
      $region16: #{su_block_forward.1} parent=11 // pred_fallthru
        _
      // Predicated region
      $region17: #{su_block_forward.1} parent=11 // pred_check
        %p187 = pneg %p80
      $region18: #{su_block_forward.1} parent=11 // pred_check_branch
        %189 = sbr.rel (%p187) target = $region20
      $region19: #{su_block_forward.1} parent=11 // pred_region
        _
      $region20: #{su_block_forward.1} parent=11 // pred_fallthru
        _
      // Predicated region
      $region21: #{su_block_forward.1} parent=11 // pred_check
        %p190 = pneg %p101
      $region22: #{su_block_forward.1} parent=11 // pred_check_branch
        %192 = sbr.rel (%p190) target = $region24
      $region23: #{su_block_forward.1} parent=11 // pred_region
        _
      $region24: #{su_block_forward.1} parent=11 // pred_fallthru
        _
      // Predicated region
      $region25: #{su_block_forward.1} parent=11 // pred_check
        %p193 = pneg %p122
      $region26: #{su_block_forward.1} parent=11 // pred_check_branch
        %195 = sbr.rel (%p193) target = $region28
      $region27: #{su_block_forward.1} parent=11 // pred_region
        _
      $region28: #{su_block_forward.1} parent=11 // pred_fallthru
        _
      // Predicated region
      $region29: #{su_block_forward.1} parent=11 // pred_check
        %p196 = pneg %p143
      $region30: #{su_block_forward.1} parent=11 // pred_check_branch
        %198 = sbr.rel (%p196) target = $region32
      $region31: #{su_block_forward.1} parent=11 // pred_region
        _
      $region32: #{su_block_forward.1} parent=11 // pred_fallthru
        _
    $region12: #{su_block_forward.1} parent=5 // pred_fallthru
      _
    %p199 = scmp.lt.s32.totalorder %s12, 2
    // Predicated region
    $region33: #{su_block_forward.1} parent=5 // pred_check
      %p200 = pneg %p199
    $region34: #{su_block_forward.1} parent=5 // pred_check_branch
      %202 = sbr.rel (%p200) target = $region36
    $region35: #{su_block_forward.1} parent=5 // pred_region
      // Predicated region
      $region37: #{su_block_forward.1} parent=35 // pred_check
        %p203 = pneg %p32
      $region38: #{su_block_forward.1} parent=35 // pred_check_branch
        %205 = sbr.rel (%p203) target = $region40
      $region39: #{su_block_forward.1} parent=35 // pred_region
        %p206 = scmp.lt.s32.totalorder %s12, 1
        %s207 = scalar_select %p206, %s12, 1
        %s208 = smul.addr %s207, 2
        %s209 = smul.addr %s208, 4
        %s210 = scalar_lea.vmem %s0, %s209
      $region40: #{su_block_forward.1} parent=35 // pred_fallthru
        _
    $region36: #{su_block_forward.1} parent=5 // pred_fallthru
      _
    %p211 = scmp.le.s32.totalorder 1, %s12
    %p212 = scmp.lt.s32.totalorder %s12, 3
    %p213 = pnand %p211, %p212
    %p214 = pneg %p213
    // Predicated region
    $region41: #{su_block_forward.1} parent=5 // pred_check
      _
    $region42: #{su_block_forward.1} parent=5 // pred_check_branch
      %216 = sbr.rel (%p213) target = $region44
    $region43: #{su_block_forward.1} parent=5 // pred_region
      %s217 = ssub.s32 %s12, 1
      %p218 = scmp.lt.s32.totalorder %s17, 1
      %s219 = scalar_select %p218, %s17, 1
      %s220 = smul.addr %s219, 2
      %s221 = smul.addr %s220, 4
      %s222 = scalar_lea.vmem %s0, %s221
      %p223 = pneg %p38
      %p224 = pneg %p35
      %p225 = pneg %p59
      %p226 = pneg %p56
      %p227 = pneg %p80
      %p228 = pneg %p77
      %p229 = pneg %p101
      %p230 = pneg %p98
      %p231 = pneg %p122
      %p232 = pneg %p119
      %p233 = pneg %p143
      %p234 = pneg %p140
      %p235 = pneg %p169
      %p236 = pneg %p166
      %p237 = scmp.lt.s32.totalorder %s17, 1
      %s238 = scalar_select %p237, %s17, 1
      %s239 = smul.addr %s238, 4
      %s240 = smul.addr %s239, 8
      %s241 = scalar_lea.vmem %s6, %s240
      %p242 = scmp.lt.s32.totalorder %s17, 1
      %s243 = scalar_select %p242, %s17, 1
      %s244 = smul.addr %s243, 2
      %s245 = smul.addr %s244, 4
      %s246 = scalar_lea.vmem %s0, %s245
      %p247 = scmp.lt.s32.totalorder %s17, 1
      %s248 = scalar_select %p247, %s17, 1
      %s249 = smul.addr %s248, 4
      %s250 = smul.addr %s249, 8
      %s251 = scalar_lea.vmem %s6, %s250
      %v253 = vld [vmem:[%s246] sm:$0xff]
      %v254 = vld [vmem:[%s1] sm:$0xf]
      %256 = vset.pattern.permute.xlu0 0
      %257 = vperm.xlu0 %256, %v254
      %v258 = vpop.permute.xlu0 %257
      %v260 = vunpack.c.l.s4 839922192
      %v261 = vunpack.c.0.s8 %v260
      %v262 = vperm.slane %v258, %v261
      %v264 = vmul.f32 %v253, %v262
      %v265 = vld [vmem:[%s2] sm:$0xf]
      %267 = vset.pattern.permute.xlu0 0
      %268 = vperm.xlu0 %267, %v265
      %v269 = vpop.permute.xlu0 %268
      %v271 = vunpack.c.l.s4 839922192
      %v272 = vunpack.c.0.s8 %v271
      %v273 = vperm.slane %v269, %v272
      %v275 = vadd.f32 %v264, %v273
      %v276 = vmax.f32 %v275, 0.0
      %v277 = vld [vmem:[%s3] sm:$0xf]
      %v278 = vld [vmem:[%s3 + $0x4] sm:$0xf]
      %v279 = vld [vmem:[%s3 + $0x8] sm:$0xf]
      %v280 = vld [vmem:[%s3 + $0xc] sm:$0xf]
      %v281 = vld [vmem:[%s3 + $0x10] sm:$0xf]
      %v282 = vld [vmem:[%s3 + $0x14] sm:$0xf]
      %284 = vst [vmem:[#allocation1] ss:$2 sm:$0xff] %v276
      %v285 = vld.sshfl [vmem:[#allocation1] sm:$0xff pattern:$0x75316420]
      %v286 = vld.sshfl [vmem:[#allocation1 + $0x8] sm:$0xff pattern:$0x75316420]
      %v289 = vpack.c.bf16 %v285, %v285
      %v290 = vpack.c.bf16 %v286, %v286
      %v291 = vld [vmem:[%s4] sm:$0xff]
      %v292 = vld [vmem:[%s4 + $0x8] sm:$0xff]
      %v293 = vld [vmem:[%s4 + $0x10] sm:$0xff]
      %v294 = vld [vmem:[%s4 + $0x18] sm:$0xff]
      %v295 = vld [vmem:[%s4 + $0x20] sm:$0xff]
      %v296 = vld [vmem:[%s4 + $0x28] sm:$0xff]
      %298 = vset.pattern.permute.xlu0 0
      %299 = vperm.xlu0 %298, %v291
      %v300 = vpop.permute.xlu0 %299
      %303 = vset.pattern.permute.xlu0 0
      %304 = vperm.xlu0 %303, %v292
      %v305 = vpop.permute.xlu0 %304
      %308 = vset.pattern.permute.xlu0 0
      %309 = vperm.xlu0 %308, %v293
      %v310 = vpop.permute.xlu0 %309
      %313 = vset.pattern.permute.xlu0 0
      %314 = vperm.xlu0 %313, %v294
      %v315 = vpop.permute.xlu0 %314
      %318 = vset.pattern.permute.xlu0 0
      %319 = vperm.xlu0 %318, %v295
      %v320 = vpop.permute.xlu0 %319
      %323 = vset.pattern.permute.xlu0 0
      %324 = vperm.xlu0 %323, %v296
      %v325 = vpop.permute.xlu0 %324
      %v333 = vunpack.c.l.b16 %v277
      %v334 = vunpack.c.l.b16 %v278
      %v335 = vunpack.c.l.b16 %v279
      %v336 = vunpack.c.l.b16 %v280
      %v337 = vunpack.c.l.b16 %v281
      %v338 = vunpack.c.l.b16 %v282
      %v339 = vpack.c.b16 %v334, %v333
      %v340 = vpack.c.b16 %v336, %v335
      %v341 = vpack.c.b16 %v338, %v337
      %vm342 = vcmask 31744
      %v344 = vsel %vm342, %v339, 0
      %v347 = vsel %vm342, %v340, 0
      %v350 = vsel %vm342, %v341, 0
      %vm352 = vcmask 1041408
      %v354 = vsel %vm352, %v289, 0
      %v357 = vsel %vm352, %v290, 0
      %359 = vmatpush.bf16.msra.mxu0 0
      %360 = vmatpush.bf16.msra.mxu0 0
      %361 = vmatpush.bf16.msra.mxu0 0
      %362 = vmatpush.bf16.msra.mxu0 0
      %363 = vmatpush.bf16.msra.mxu0 0
      %364 = vmatpush.bf16.msra.mxu0 0
      %365 = vmatpush.bf16.msra.mxu0 0
      %366 = vmatpush.bf16.msra.mxu0 %v354
      %367 = vmatmul.bf16.gmra.mxu0 %v344
      %v368 = vpop.f32.mrf.mxu0
      %v369 = vadd.f32 %v300, %v368
      %v370 = vpop.f32.mrf.mxu0
      %v371 = vadd.f32 %v305, %v370
      %372 = vmatmul.bf16.gmra.mxu0 %v347
      %v373 = vpop.f32.mrf.mxu0
      %v374 = vadd.f32 %v310, %v373
      %v375 = vpop.f32.mrf.mxu0
      %v376 = vadd.f32 %v315, %v375
      %377 = vmatmul.bf16.gmra.mxu0 %v350
      %v378 = vpop.f32.mrf.mxu0
      %v379 = vadd.f32 %v320, %v378
      %v380 = vpop.f32.mrf.mxu0
      %v381 = vadd.f32 %v325, %v380
      %382 = vdwg.mxu0
      %383 = vmatpush.bf16.msra.mxu0 0
      %384 = vmatpush.bf16.msra.mxu0 0
      %385 = vmatpush.bf16.msra.mxu0 0
      %386 = vmatpush.bf16.msra.mxu0 0
      %387 = vmatpush.bf16.msra.mxu0 0
      %388 = vmatpush.bf16.msra.mxu0 0
      %389 = vmatpush.bf16.msra.mxu0 0
      %390 = vmatpush.bf16.msra.mxu0 %v357
      %391 = vmatmul.bf16.gmra.mxu0 %v344
      %v392 = vpop.f32.mrf.mxu0
      %v393 = vadd.f32 %v300, %v392
      %v394 = vpop.f32.mrf.mxu0
      %v395 = vadd.f32 %v305, %v394
      %396 = vmatmul.bf16.gmra.mxu0 %v347
      %v397 = vpop.f32.mrf.mxu0
      %v398 = vadd.f32 %v310, %v397
      %v399 = vpop.f32.mrf.mxu0
      %v400 = vadd.f32 %v315, %v399
      %401 = vmatmul.bf16.gmra.mxu0 %v350
      %v402 = vpop.f32.mrf.mxu0
      %v403 = vadd.f32 %v320, %v402
      %v404 = vpop.f32.mrf.mxu0
      %v405 = vadd.f32 %v325, %v404
      %406 = vdwg.mxu0
      %v407 = vmax.f32 %v369, 0.0
      %v408 = vmax.f32 %v393, 0.0
      %v409 = vmax.f32 %v371, 0.0
      %v410 = vmax.f32 %v395, 0.0
      %v411 = vmax.f32 %v374, 0.0
      %v412 = vmax.f32 %v398, 0.0
      %v413 = vmax.f32 %v376, 0.0
      %v414 = vmax.f32 %v400, 0.0
      %v415 = vmax.f32 %v379, 0.0
      %v416 = vmax.f32 %v403, 0.0
      %v417 = vmax.f32 %v381, 0.0
      %v418 = vmax.f32 %v405, 0.0
      %v419 = vpack.c.bf16 %v408, %v407
      %v420 = vpack.c.bf16 %v410, %v409
      %v421 = vpack.c.bf16 %v412, %v411
      %v422 = vpack.c.bf16 %v414, %v413
      %v423 = vpack.c.bf16 %v416, %v415
      %v424 = vpack.c.bf16 %v418, %v417
      %v425 = vlaneseq
      %v426 = vand.u32 %v425, 127
      %v427 = vadd.s32 %v426, 128
      %vm428 = vcmp.lt.s32.totalorder %v426, 0
      %v429 = vsub.s32 0, %v426
      %v430 = vsel %vm428, %v429, %v426
      %v431 = vshrl.u32 %v430, 4
      %v432 = vand.u32 %v430, 15
      %v433 = vsub.s32 0, %v432
      %v434 = vsel %vm428, %v433, %v432
      %vm435 = vcmp.lt.s32.totalorder %v427, 0
      %v436 = vsub.s32 0, %v427
      %v437 = vsel %vm435, %v436, %v427
      %v438 = vshrl.u32 %v437, 4
      %v439 = vand.u32 %v437, 15
      %v440 = vsub.s32 0, %v439
      %v441 = vsel %vm435, %v440, %v439
      %vm442 = vcmp.ne.s32.totalorder %v434, 0
      %vm443 = vcmp.ne.s32.totalorder %v441, 0
      %vm444 = vcmp.lt.s32.totalorder %v434, 0
      %vm445 = vcmp.lt.s32.totalorder %v441, 0
      %vm446 = vmand %vm444, %vm442
      %vm447 = vmand %vm445, %vm443
      %v448 = vadd.s32 %v434, 16
      %v449 = vadd.s32 %v441, 16
      %v450 = vsel %vm446, %v448, %v434
      %v451 = vsel %vm447, %v449, %v441
      %vm452 = vcmp.eq.s32.totalorder %v450, 15
      %vm453 = vcmp.eq.s32.totalorder %v451, 15
      %v454 = vsel %vm452, 1, 0
      %v455 = vsel %vm453, 1, 0
      %vm456 = vcmp.eq.s32.totalorder %v454, 1
      %vm457 = vcmp.eq.s32.totalorder %v455, 1
      %vm458 = vmpackc.low %vm457, %vm456
      %v459 = vsel %vm458, 0, %v419
      %v460 = vsel %vm458, 0, %v420
      %v461 = vsel %vm458, 0, %v421
      %v462 = vsel %vm458, 0, %v422
      %v463 = vsel %vm458, 0, %v423
      %v464 = vsel %vm458, 0, %v424
      %vm465 = vcmp.eq.s32.totalorder %v450, 0
      %vm466 = vcmp.eq.s32.totalorder %v451, 0
      %v467 = vsel %vm465, 1, 0
      %v468 = vsel %vm466, 1, 0
      %vm469 = vcmp.eq.s32.totalorder %v467, 1
      %vm470 = vcmp.eq.s32.totalorder %v468, 1
      %vm471 = vmpackc.low %vm470, %vm469
      %v472 = vsel %vm471, 0, %v419
      %v473 = vsel %vm471, 0, %v420
      %v474 = vsel %vm471, 0, %v421
      %v475 = vsel %vm471, 0, %v422
      %v476 = vsel %vm471, 0, %v423
      %v477 = vsel %vm471, 0, %v424
      %v478 = vld [vmem:[%s5] sm:$0xf]
      %v479 = vld [vmem:[%s5 + $0x4] sm:$0x3]
      %v480 = vld [vmem:[%s5 + $0x8] sm:$0xf]
      %v481 = vld [vmem:[%s5 + $0xc] sm:$0x3]
      %v482 = vld [vmem:[%s5 + $0x10] sm:$0xf]
      %v483 = vld [vmem:[%s5 + $0x14] sm:$0x3]
      %v484 = vld [vmem:[%s5 + $0x18] sm:$0xf]
      %v485 = vld [vmem:[%s5 + $0x1c] sm:$0x3]
      %v486 = vld [vmem:[%s5 + $0x20] sm:$0xf]
      %v487 = vld [vmem:[%s5 + $0x24] sm:$0x3]
      %v488 = vld [vmem:[%s5 + $0x28] sm:$0xf]
      %v489 = vld [vmem:[%s5 + $0x2c] sm:$0x3]
      %v490 = vld [vmem:[%s5 + $0x30] sm:$0xf]
      %v491 = vld [vmem:[%s5 + $0x34] sm:$0x3]
      %v492 = vld [vmem:[%s5 + $0x38] sm:$0xf]
      %v493 = vld [vmem:[%s5 + $0x3c] sm:$0x3]
      %v494 = vld [vmem:[%s5 + $0x40] sm:$0xf]
      %v495 = vld [vmem:[%s5 + $0x44] sm:$0x3]
      %v502 = vunpack.c.l.b16 %v459
      %v503 = vunpack.c.h.b16 %v459
      %v504 = vunpack.c.l.b16 %v460
      %v505 = vunpack.c.h.b16 %v460
      %v506 = vunpack.c.l.b16 %v461
      %v507 = vunpack.c.h.b16 %v461
      %v508 = vunpack.c.l.b16 %v462
      %v509 = vunpack.c.h.b16 %v462
      %v510 = vunpack.c.l.b16 %v463
      %v511 = vunpack.c.h.b16 %v463
      %v512 = vunpack.c.l.b16 %v464
      %v513 = vunpack.c.h.b16 %v464
      %v514 = vpack.c.b16 %v504, %v502
      %v515 = vpack.c.b16 %v505, %v503
      %v516 = vpack.c.b16 %v508, %v506
      %v517 = vpack.c.b16 %v509, %v507
      %v518 = vpack.c.b16 %v512, %v510
      %v519 = vpack.c.b16 %v513, %v511
      %520 = vrot.lane.b32.xlu0 %v514, 17
      %v521 = vpop.permute.xlu0 %520
      %522 = vrot.lane.b32.xlu0 %v515, 17
      %v523 = vpop.permute.xlu0 %522
      %524 = vrot.lane.b32.xlu0 %v516, 17
      %v525 = vpop.permute.xlu0 %524
      %526 = vrot.lane.b32.xlu0 %v517, 17
      %v527 = vpop.permute.xlu0 %526
      %528 = vrot.lane.b32.xlu0 %v518, 17
      %v529 = vpop.permute.xlu0 %528
      %530 = vrot.lane.b32.xlu0 %v519, 17
      %v531 = vpop.permute.xlu0 %530
      %vm532 = vcmask 138240
      %v533 = vsel %vm532, %v521, %v523
      %v534 = vsel %vm532, %v525, %v527
      %v535 = vsel %vm532, %v529, %v531
      %vm539 = vcmask 138240
      %v542 = vsel %vm539, 0, %v521
      %v545 = vsel %vm539, 0, %v525
      %v548 = vsel %vm539, 0, %v529
      %v556 = vunpack.c.l.b16 %v419
      %v557 = vunpack.c.h.b16 %v419
      %v558 = vunpack.c.l.b16 %v420
      %v559 = vunpack.c.h.b16 %v420
      %v560 = vunpack.c.l.b16 %v421
      %v561 = vunpack.c.h.b16 %v421
      %v562 = vunpack.c.l.b16 %v422
      %v563 = vunpack.c.h.b16 %v422
      %v564 = vunpack.c.l.b16 %v423
      %v565 = vunpack.c.h.b16 %v423
      %v566 = vunpack.c.l.b16 %v424
      %v567 = vunpack.c.h.b16 %v424
      %v568 = vpack.c.b16 %v558, %v556
      %v569 = vpack.c.b16 %v559, %v557
      %v570 = vpack.c.b16 %v562, %v560
      %v571 = vpack.c.b16 %v563, %v561
      %v572 = vpack.c.b16 %v566, %v564
      %v573 = vpack.c.b16 %v567, %v565
      %574 = vrot.lane.b32.xlu0 %v568, 16
      %v575 = vpop.permute.xlu0 %574
      %576 = vrot.lane.b32.xlu0 %v569, 16
      %v577 = vpop.permute.xlu0 %576
      %578 = vrot.lane.b32.xlu0 %v570, 16
      %v579 = vpop.permute.xlu0 %578
      %580 = vrot.lane.b32.xlu0 %v571, 16
      %v581 = vpop.permute.xlu0 %580
      %582 = vrot.lane.b32.xlu0 %v572, 16
      %v583 = vpop.permute.xlu0 %582
      %584 = vrot.lane.b32.xlu0 %v573, 16
      %v585 = vpop.permute.xlu0 %584
      %vm586 = vcmask 130048
      %v587 = vsel %vm586, %v575, %v577
      %v588 = vsel %vm586, %v579, %v581
      %v589 = vsel %vm586, %v583, %v585
      %vm593 = vcmask 130048
      %v595 = vsel %vm593, 0, %v575
      %v598 = vsel %vm593, 0, %v579
      %v601 = vsel %vm593, 0, %v583
      %v605 = vunpack.c.l.b16 %v480
      %v606 = vunpack.c.l.b16 %v481
      %v607 = vpack.c.b16 %v606, %v605
      %vm608 = vcmask 392192
      %v610 = vsel %vm608, %v607, 0
      %612 = vmatpush.bf16.msra.mxu0 0
      %613 = vmatpush.bf16.msra.mxu0 0
      %614 = vmatpush.bf16.msra.mxu0 0
      %615 = vmatpush.bf16.msra.mxu0 0
      %616 = vmatpush.bf16.msra.mxu0 0
      %617 = vmatpush.bf16.msra.mxu0 %v601
      %618 = vmatpush.bf16.msra.mxu0 %v598
      %619 = vmatpush.bf16.msra.mxu0 %v595
      %620 = vmatmul.bf16.gmra.mxu0 %v610
      %v621 = vpop.f32.mrf.mxu0
      %v622 = vadd.f32 0.0, %v621
      %v623 = vpop.f32.mrf.mxu0
      %v624 = vadd.f32 0.0, %v623
      %625 = vdwg.mxu0
      %626 = vmatpush.bf16.msra.mxu0 0
      %627 = vmatpush.bf16.msra.mxu0 0
      %628 = vmatpush.bf16.msra.mxu0 0
      %629 = vmatpush.bf16.msra.mxu0 0
      %630 = vmatpush.bf16.msra.mxu0 0
      %631 = vmatpush.bf16.msra.mxu0 %v589
      %632 = vmatpush.bf16.msra.mxu0 %v588
      %633 = vmatpush.bf16.msra.mxu0 %v587
      %634 = vmatmul.bf16.gmra.mxu0 %v610
      %v635 = vpop.f32.mrf.mxu0
      %v636 = vadd.f32 0.0, %v635
      %v637 = vpop.f32.mrf.mxu0
      %v638 = vadd.f32 0.0, %v637
      %639 = vdwg.mxu0
      %v642 = vunpack.c.l.b16 %v478
      %v643 = vunpack.c.l.b16 %v479
      %v644 = vpack.c.b16 %v643, %v642
      %v646 = vsel %vm608, %v644, 0
      %648 = vmatpush.bf16.msra.mxu0 0
      %649 = vmatpush.bf16.msra.mxu0 0
      %650 = vmatpush.bf16.msra.mxu0 0
      %651 = vmatpush.bf16.msra.mxu0 0
      %652 = vmatpush.bf16.msra.mxu0 0
      %653 = vmatpush.bf16.msra.mxu0 %v548
      %654 = vmatpush.bf16.msra.mxu0 %v545
      %655 = vmatpush.bf16.msra.mxu0 %v542
      %656 = vmatmul.bf16.gmra.mxu0 %v646
      %v657 = vpop.f32.mrf.mxu0
      %v658 = vadd.f32 %v622, %v657
      %v659 = vpop.f32.mrf.mxu0
      %v660 = vadd.f32 %v624, %v659
      %661 = vdwg.mxu0
      %662 = vmatpush.bf16.msra.mxu0 0
      %663 = vmatpush.bf16.msra.mxu0 0
      %664 = vmatpush.bf16.msra.mxu0 0
      %665 = vmatpush.bf16.msra.mxu0 0
      %666 = vmatpush.bf16.msra.mxu0 0
      %667 = vmatpush.bf16.msra.mxu0 %v535
      %668 = vmatpush.bf16.msra.mxu0 %v534
      %669 = vmatpush.bf16.msra.mxu0 %v533
      %670 = vmatmul.bf16.gmra.mxu0 %v646
      %v671 = vpop.f32.mrf.mxu0
      %v672 = vadd.f32 %v636, %v671
      %v673 = vpop.f32.mrf.mxu0
      %v674 = vadd.f32 %v638, %v673
      %675 = vdwg.mxu0
      %v682 = vunpack.c.l.b16 %v472
      %v683 = vunpack.c.h.b16 %v472
      %v684 = vunpack.c.l.b16 %v473
      %v685 = vunpack.c.h.b16 %v473
      %v686 = vunpack.c.l.b16 %v474
      %v687 = vunpack.c.h.b16 %v474
      %v688 = vunpack.c.l.b16 %v475
      %v689 = vunpack.c.h.b16 %v475
      %v690 = vunpack.c.l.b16 %v476
      %v691 = vunpack.c.h.b16 %v476
      %v692 = vunpack.c.l.b16 %v477
      %v693 = vunpack.c.h.b16 %v477
      %v694 = vpack.c.b16 %v684, %v682
      %v695 = vpack.c.b16 %v685, %v683
      %v696 = vpack.c.b16 %v688, %v686
      %v697 = vpack.c.b16 %v689, %v687
      %v698 = vpack.c.b16 %v692, %v690
      %v699 = vpack.c.b16 %v693, %v691
      %700 = vrot.lane.b32.xlu0 %v694, 15
      %v701 = vpop.permute.xlu0 %700
      %702 = vrot.lane.b32.xlu0 %v695, 15
      %v703 = vpop.permute.xlu0 %702
      %704 = vrot.lane.b32.xlu0 %v696, 15
      %v705 = vpop.permute.xlu0 %704
      %706 = vrot.lane.b32.xlu0 %v697, 15
      %v707 = vpop.permute.xlu0 %706
      %708 = vrot.lane.b32.xlu0 %v698, 15
      %v709 = vpop.permute.xlu0 %708
      %710 = vrot.lane.b32.xlu0 %v699, 15
      %v711 = vpop.permute.xlu0 %710
      %vm712 = vcmask 121856
      %v713 = vsel %vm712, %v701, %v703
      %v714 = vsel %vm712, %v705, %v707
      %v715 = vsel %vm712, %v709, %v711
      %vm719 = vcmask 121856
      %v721 = vsel %vm719, 0, %v701
      %v724 = vsel %vm719, 0, %v705
      %v727 = vsel %vm719, 0, %v709
      %v731 = vunpack.c.l.b16 %v482
      %v732 = vunpack.c.l.b16 %v483
      %v733 = vpack.c.b16 %v732, %v731
      %v735 = vsel %vm608, %v733, 0
      %737 = vmatpush.bf16.msra.mxu0 0
      %738 = vmatpush.bf16.msra.mxu0 0
      %739 = vmatpush.bf16.msra.mxu0 0
      %740 = vmatpush.bf16.msra.mxu0 0
      %741 = vmatpush.bf16.msra.mxu0 0
      %742 = vmatpush.bf16.msra.mxu0 %v727
      %743 = vmatpush.bf16.msra.mxu0 %v724
      %744 = vmatpush.bf16.msra.mxu0 %v721
      %745 = vmatmul.bf16.gmra.mxu0 %v735
      %v746 = vpop.f32.mrf.mxu0
      %v747 = vadd.f32 0.0, %v746
      %v748 = vpop.f32.mrf.mxu0
      %v749 = vadd.f32 0.0, %v748
      %750 = vdwg.mxu0
      %751 = vmatpush.bf16.msra.mxu0 0
      %752 = vmatpush.bf16.msra.mxu0 0
      %753 = vmatpush.bf16.msra.mxu0 0
      %754 = vmatpush.bf16.msra.mxu0 0
      %755 = vmatpush.bf16.msra.mxu0 0
      %756 = vmatpush.bf16.msra.mxu0 %v715
      %757 = vmatpush.bf16.msra.mxu0 %v714
      %758 = vmatpush.bf16.msra.mxu0 %v713
      %759 = vmatmul.bf16.gmra.mxu0 %v735
      %v760 = vpop.f32.mrf.mxu0
      %v761 = vadd.f32 0.0, %v760
      %v762 = vpop.f32.mrf.mxu0
      %v763 = vadd.f32 0.0, %v762
      %764 = vdwg.mxu0
      %v765 = vadd.f32 %v658, %v747
      %v766 = vadd.f32 %v672, %v761
      %v767 = vadd.f32 %v660, %v749
      %v768 = vadd.f32 %v674, %v763
      %769 = vrot.lane.b32.xlu0 %v514, 1
      %v770 = vpop.permute.xlu0 %769
      %771 = vrot.lane.b32.xlu0 %v515, 1
      %v772 = vpop.permute.xlu0 %771
      %773 = vrot.lane.b32.xlu0 %v516, 1
      %v774 = vpop.permute.xlu0 %773
      %775 = vrot.lane.b32.xlu0 %v517, 1
      %v776 = vpop.permute.xlu0 %775
      %777 = vrot.lane.b32.xlu0 %v518, 1
      %v778 = vpop.permute.xlu0 %777
      %779 = vrot.lane.b32.xlu0 %v519, 1
      %v780 = vpop.permute.xlu0 %779
      %vm781 = vcmask 7168
      %v782 = vsel %vm781, %v770, %v772
      %v783 = vsel %vm781, %v774, %v776
      %v784 = vsel %vm781, %v778, %v780
      %vm788 = vcmask 7168
      %v790 = vsel %vm788, 0, %v770
      %v793 = vsel %vm788, 0, %v774
      %v796 = vsel %vm788, 0, %v778
      %v800 = vunpack.c.l.b16 %v484
      %v801 = vunpack.c.l.b16 %v485
      %v802 = vpack.c.b16 %v801, %v800
      %v804 = vsel %vm608, %v802, 0
      %806 = vmatpush.bf16.msra.mxu0 0
      %807 = vmatpush.bf16.msra.mxu0 0
      %808 = vmatpush.bf16.msra.mxu0 0
      %809 = vmatpush.bf16.msra.mxu0 0
      %810 = vmatpush.bf16.msra.mxu0 0
      %811 = vmatpush.bf16.msra.mxu0 %v796
      %812 = vmatpush.bf16.msra.mxu0 %v793
      %813 = vmatpush.bf16.msra.mxu0 %v790
      %814 = vmatmul.bf16.gmra.mxu0 %v804
      %v815 = vpop.f32.mrf.mxu0
      %v816 = vadd.f32 0.0, %v815
      %v817 = vpop.f32.mrf.mxu0
      %v818 = vadd.f32 0.0, %v817
      %819 = vdwg.mxu0
      %820 = vmatpush.bf16.msra.mxu0 0
      %821 = vmatpush.bf16.msra.mxu0 0
      %822 = vmatpush.bf16.msra.mxu0 0
      %823 = vmatpush.bf16.msra.mxu0 0
      %824 = vmatpush.bf16.msra.mxu0 0
      %825 = vmatpush.bf16.msra.mxu0 %v784
      %826 = vmatpush.bf16.msra.mxu0 %v783
      %827 = vmatpush.bf16.msra.mxu0 %v782
      %828 = vmatmul.bf16.gmra.mxu0 %v804
      %v829 = vpop.f32.mrf.mxu0
      %v830 = vadd.f32 0.0, %v829
      %v831 = vpop.f32.mrf.mxu0
      %v832 = vadd.f32 0.0, %v831
      %833 = vdwg.mxu0
      %v834 = vadd.f32 %v765, %v816
      %v835 = vadd.f32 %v766, %v830
      %v836 = vadd.f32 %v767, %v818
      %v837 = vadd.f32 %v768, %v832
      %v840 = vunpack.c.l.b16 %v486
      %v841 = vunpack.c.l.b16 %v487
      %v842 = vpack.c.b16 %v841, %v840
      %v850 = vsel %vm608, %v842, 0
      %852 = vmatpush.bf16.msra.mxu0 0
      %853 = vmatpush.bf16.msra.mxu0 0
      %854 = vmatpush.bf16.msra.mxu0 0
      %855 = vmatpush.bf16.msra.mxu0 0
      %856 = vmatpush.bf16.msra.mxu0 0
      %857 = vmatpush.bf16.msra.mxu0 %v572
      %858 = vmatpush.bf16.msra.mxu0 %v570
      %859 = vmatpush.bf16.msra.mxu0 %v568
      %860 = vmatmul.bf16.gmra.mxu0 %v850
      %v861 = vpop.f32.mrf.mxu0
      %v862 = vadd.f32 0.0, %v861
      %v863 = vpop.f32.mrf.mxu0
      %v864 = vadd.f32 0.0, %v863
      %865 = vdwg.mxu0
      %866 = vmatpush.bf16.msra.mxu0 0
      %867 = vmatpush.bf16.msra.mxu0 0
      %868 = vmatpush.bf16.msra.mxu0 0
      %869 = vmatpush.bf16.msra.mxu0 0
      %870 = vmatpush.bf16.msra.mxu0 0
      %871 = vmatpush.bf16.msra.mxu0 %v573
      %872 = vmatpush.bf16.msra.mxu0 %v571
      %873 = vmatpush.bf16.msra.mxu0 %v569
      %874 = vmatmul.bf16.gmra.mxu0 %v850
      %v875 = vpop.f32.mrf.mxu0
      %v876 = vadd.f32 0.0, %v875
      %v877 = vpop.f32.mrf.mxu0
      %v878 = vadd.f32 0.0, %v877
      %879 = vdwg.mxu0
      %v880 = vadd.f32 %v834, %v862
      %v881 = vadd.f32 %v835, %v876
      %v882 = vadd.f32 %v836, %v864
      %v883 = vadd.f32 %v837, %v878
      %884 = vrot.lane.b32.xlu0 %v694, 127
      %v885 = vpop.permute.xlu0 %884
      %886 = vrot.lane.b32.xlu0 %v695, 127
      %v887 = vpop.permute.xlu0 %886
      %888 = vrot.lane.b32.xlu0 %v696, 127
      %v889 = vpop.permute.xlu0 %888
      %890 = vrot.lane.b32.xlu0 %v697, 127
      %v891 = vpop.permute.xlu0 %890
      %892 = vrot.lane.b32.xlu0 %v698, 127
      %v893 = vpop.permute.xlu0 %892
      %894 = vrot.lane.b32.xlu0 %v699, 127
      %v895 = vpop.permute.xlu0 %894
      %vm896 = vcmask 1039360
      %v897 = vsel %vm896, %v885, %v887
      %v898 = vsel %vm896, %v889, %v891
      %v899 = vsel %vm896, %v893, %v895
      %vm903 = vcmask 1039360
      %v905 = vsel %vm903, %v887, 0
      %v908 = vsel %vm903, %v891, 0
      %v911 = vsel %vm903, %v895, 0
      %v915 = vunpack.c.l.b16 %v488
      %v916 = vunpack.c.l.b16 %v489
      %v917 = vpack.c.b16 %v916, %v915
      %v919 = vsel %vm608, %v917, 0
      %921 = vmatpush.bf16.msra.mxu0 0
      %922 = vmatpush.bf16.msra.mxu0 0
      %923 = vmatpush.bf16.msra.mxu0 0
      %924 = vmatpush.bf16.msra.mxu0 0
      %925 = vmatpush.bf16.msra.mxu0 0
      %926 = vmatpush.bf16.msra.mxu0 %v899
      %927 = vmatpush.bf16.msra.mxu0 %v898
      %928 = vmatpush.bf16.msra.mxu0 %v897
      %929 = vmatmul.bf16.gmra.mxu0 %v919
      %v930 = vpop.f32.mrf.mxu0
      %v931 = vadd.f32 0.0, %v930
      %v932 = vpop.f32.mrf.mxu0
      %v933 = vadd.f32 0.0, %v932
      %934 = vdwg.mxu0
      %935 = vmatpush.bf16.msra.mxu0 0
      %936 = vmatpush.bf16.msra.mxu0 0
      %937 = vmatpush.bf16.msra.mxu0 0
      %938 = vmatpush.bf16.msra.mxu0 0
      %939 = vmatpush.bf16.msra.mxu0 0
      %940 = vmatpush.bf16.msra.mxu0 %v911
      %941 = vmatpush.bf16.msra.mxu0 %v908
      %942 = vmatpush.bf16.msra.mxu0 %v905
      %943 = vmatmul.bf16.gmra.mxu0 %v919
      %v944 = vpop.f32.mrf.mxu0
      %v945 = vadd.f32 0.0, %v944
      %v946 = vpop.f32.mrf.mxu0
      %v947 = vadd.f32 0.0, %v946
      %948 = vdwg.mxu0
      %v949 = vadd.f32 %v880, %v931
      %v950 = vadd.f32 %v881, %v945
      %v951 = vadd.f32 %v882, %v933
      %v952 = vadd.f32 %v883, %v947
      %953 = vrot.lane.b32.xlu0 %v514, 113
      %v954 = vpop.permute.xlu0 %953
      %955 = vrot.lane.b32.xlu0 %v515, 113
      %v956 = vpop.permute.xlu0 %955
      %957 = vrot.lane.b32.xlu0 %v516, 113
      %v958 = vpop.permute.xlu0 %957
      %959 = vrot.lane.b32.xlu0 %v517, 113
      %v960 = vpop.permute.xlu0 %959
      %961 = vrot.lane.b32.xlu0 %v518, 113
      %v962 = vpop.permute.xlu0 %961
      %963 = vrot.lane.b32.xlu0 %v519, 113
      %v964 = vpop.permute.xlu0 %963
      %vm965 = vcmask 924672
      %v966 = vsel %vm965, %v954, %v956
      %v967 = vsel %vm965, %v958, %v960
      %v968 = vsel %vm965, %v962, %v964
      %vm972 = vcmask 924672
      %v974 = vsel %vm972, %v956, 0
      %v977 = vsel %vm972, %v960, 0
      %v980 = vsel %vm972, %v964, 0
      %v984 = vunpack.c.l.b16 %v490
      %v985 = vunpack.c.l.b16 %v491
      %v986 = vpack.c.b16 %v985, %v984
      %v988 = vsel %vm608, %v986, 0
      %990 = vmatpush.bf16.msra.mxu0 0
      %991 = vmatpush.bf16.msra.mxu0 0
      %992 = vmatpush.bf16.msra.mxu0 0
      %993 = vmatpush.bf16.msra.mxu0 0
      %994 = vmatpush.bf16.msra.mxu0 0
      %995 = vmatpush.bf16.msra.mxu0 %v968
      %996 = vmatpush.bf16.msra.mxu0 %v967
      %997 = vmatpush.bf16.msra.mxu0 %v966
      %998 = vmatmul.bf16.gmra.mxu0 %v988
      %v999 = vpop.f32.mrf.mxu0
      %v1000 = vadd.f32 0.0, %v999
      %v1001 = vpop.f32.mrf.mxu0
      %v1002 = vadd.f32 0.0, %v1001
      %1003 = vdwg.mxu0
      %1004 = vmatpush.bf16.msra.mxu0 0
      %1005 = vmatpush.bf16.msra.mxu0 0
      %1006 = vmatpush.bf16.msra.mxu0 0
      %1007 = vmatpush.bf16.msra.mxu0 0
      %1008 = vmatpush.bf16.msra.mxu0 0
      %1009 = vmatpush.bf16.msra.mxu0 %v980
      %1010 = vmatpush.bf16.msra.mxu0 %v977
      %1011 = vmatpush.bf16.msra.mxu0 %v974
      %1012 = vmatmul.bf16.gmra.mxu0 %v988
      %v1013 = vpop.f32.mrf.mxu0
      %v1014 = vadd.f32 0.0, %v1013
      %v1015 = vpop.f32.mrf.mxu0
      %v1016 = vadd.f32 0.0, %v1015
      %1017 = vdwg.mxu0
      %v1018 = vadd.f32 %v949, %v1000
      %v1019 = vadd.f32 %v950, %v1014
      %v1020 = vadd.f32 %v951, %v1002
      %v1021 = vadd.f32 %v952, %v1016
      %1022 = vrot.lane.b32.xlu0 %v568, 112
      %v1023 = vpop.permute.xlu0 %1022
      %1024 = vrot.lane.b32.xlu0 %v569, 112
      %v1025 = vpop.permute.xlu0 %1024
      %1026 = vrot.lane.b32.xlu0 %v570, 112
      %v1027 = vpop.permute.xlu0 %1026
      %1028 = vrot.lane.b32.xlu0 %v571, 112
      %v1029 = vpop.permute.xlu0 %1028
      %1030 = vrot.lane.b32.xlu0 %v572, 112
      %v1031 = vpop.permute.xlu0 %1030
      %1032 = vrot.lane.b32.xlu0 %v573, 112
      %v1033 = vpop.permute.xlu0 %1032
      %vm1034 = vcmask 916480
      %v1035 = vsel %vm1034, %v1023, %v1025
      %v1036 = vsel %vm1034, %v1027, %v1029
      %v1037 = vsel %vm1034, %v1031, %v1033
      %vm1041 = vcmask 916480
      %v1043 = vsel %vm1041, %v1025, 0
      %v1046 = vsel %vm1041, %v1029, 0
      %v1049 = vsel %vm1041, %v1033, 0
      %v1053 = vunpack.c.l.b16 %v492
      %v1054 = vunpack.c.l.b16 %v493
      %v1055 = vpack.c.b16 %v1054, %v1053
      %v1057 = vsel %vm608, %v1055, 0
      %1059 = vmatpush.bf16.msra.mxu0 0
      %1060 = vmatpush.bf16.msra.mxu0 0
      %1061 = vmatpush.bf16.msra.mxu0 0
      %1062 = vmatpush.bf16.msra.mxu0 0
      %1063 = vmatpush.bf16.msra.mxu0 0
      %1064 = vmatpush.bf16.msra.mxu0 %v1037
      %1065 = vmatpush.bf16.msra.mxu0 %v1036
      %1066 = vmatpush.bf16.msra.mxu0 %v1035
      %1067 = vmatmul.bf16.gmra.mxu0 %v1057
      %v1068 = vpop.f32.mrf.mxu0
      %v1069 = vadd.f32 0.0, %v1068
      %v1070 = vpop.f32.mrf.mxu0
      %v1071 = vadd.f32 0.0, %v1070
      %1072 = vdwg.mxu0
      %1073 = vmatpush.bf16.msra.mxu0 0
      %1074 = vmatpush.bf16.msra.mxu0 0
      %1075 = vmatpush.bf16.msra.mxu0 0
      %1076 = vmatpush.bf16.msra.mxu0 0
      %1077 = vmatpush.bf16.msra.mxu0 0
      %1078 = vmatpush.bf16.msra.mxu0 %v1049
      %1079 = vmatpush.bf16.msra.mxu0 %v1046
      %1080 = vmatpush.bf16.msra.mxu0 %v1043
      %1081 = vmatmul.bf16.gmra.mxu0 %v1057
      %v1082 = vpop.f32.mrf.mxu0
      %v1083 = vadd.f32 0.0, %v1082
      %v1084 = vpop.f32.mrf.mxu0
      %v1085 = vadd.f32 0.0, %v1084
      %1086 = vdwg.mxu0
      %v1087 = vadd.f32 %v1018, %v1069
      %v1088 = vadd.f32 %v1019, %v1083
      %v1089 = vadd.f32 %v1020, %v1071
      %v1090 = vadd.f32 %v1021, %v1085
      %1091 = vrot.lane.b32.xlu0 %v694, 111
      %v1092 = vpop.permute.xlu0 %1091
      %1093 = vrot.lane.b32.xlu0 %v695, 111
      %v1094 = vpop.permute.xlu0 %1093
      %1095 = vrot.lane.b32.xlu0 %v696, 111
      %v1096 = vpop.permute.xlu0 %1095
      %1097 = vrot.lane.b32.xlu0 %v697, 111
      %v1098 = vpop.permute.xlu0 %1097
      %1099 = vrot.lane.b32.xlu0 %v698, 111
      %v1100 = vpop.permute.xlu0 %1099
      %1101 = vrot.lane.b32.xlu0 %v699, 111
      %v1102 = vpop.permute.xlu0 %1101
      %vm1103 = vcmask 908288
      %v1104 = vsel %vm1103, %v1092, %v1094
      %v1105 = vsel %vm1103, %v1096, %v1098
      %v1106 = vsel %vm1103, %v1100, %v1102
      %vm1110 = vcmask 908288
      %v1112 = vsel %vm1110, %v1094, 0
      %v1115 = vsel %vm1110, %v1098, 0
      %v1118 = vsel %vm1110, %v1102, 0
      %v1122 = vunpack.c.l.b16 %v494
      %v1123 = vunpack.c.l.b16 %v495
      %v1124 = vpack.c.b16 %v1123, %v1122
      %v1126 = vsel %vm608, %v1124, 0
      %1128 = vmatpush.bf16.msra.mxu0 0
      %1129 = vmatpush.bf16.msra.mxu0 0
      %1130 = vmatpush.bf16.msra.mxu0 0
      %1131 = vmatpush.bf16.msra.mxu0 0
      %1132 = vmatpush.bf16.msra.mxu0 0
      %1133 = vmatpush.bf16.msra.mxu0 %v1106
      %1134 = vmatpush.bf16.msra.mxu0 %v1105
      %1135 = vmatpush.bf16.msra.mxu0 %v1104
      %1136 = vmatmul.bf16.gmra.mxu0 %v1126
      %v1137 = vpop.f32.mrf.mxu0
      %v1138 = vadd.f32 0.0, %v1137
      %v1139 = vpop.f32.mrf.mxu0
      %v1140 = vadd.f32 0.0, %v1139
      %1141 = vdwg.mxu0
      %1142 = vmatpush.bf16.msra.mxu0 0
      %1143 = vmatpush.bf16.msra.mxu0 0
      %1144 = vmatpush.bf16.msra.mxu0 0
      %1145 = vmatpush.bf16.msra.mxu0 0
      %1146 = vmatpush.bf16.msra.mxu0 0
      %1147 = vmatpush.bf16.msra.mxu0 %v1118
      %1148 = vmatpush.bf16.msra.mxu0 %v1115
      %1149 = vmatpush.bf16.msra.mxu0 %v1112
      %1150 = vmatmul.bf16.gmra.mxu0 %v1126
      %v1151 = vpop.f32.mrf.mxu0
      %v1152 = vadd.f32 0.0, %v1151
      %v1153 = vpop.f32.mrf.mxu0
      %v1154 = vadd.f32 0.0, %v1153
      %1155 = vdwg.mxu0
      %v1156 = vadd.f32 %v1087, %v1138
      %v1157 = vadd.f32 %v1088, %v1152
      %v1158 = vadd.f32 %v1089, %v1140
      %v1159 = vadd.f32 %v1090, %v1154
      %1160 = vst [vmem:[%s251] sm:$0xff] %v1156
      %1161 = vst [vmem:[%s251 + $0x8] sm:$0xff] %v1157
      %1162 = vst [vmem:[%s251 + $0x10] sm:$0xf] %v1158
      %1163 = vst [vmem:[%s251 + $0x18] sm:$0xf] %v1159
      %s1165 = scalar_lea.vmem [#allocation1], 1
      %1166 = vst [vmem:[%s1165] ss:$2 sm:$0xff] %v253
      %v1167 = vld.sshfl [vmem:[#allocation1] sm:$0xff pattern:$0x75316420]
      %v1168 = vld.sshfl [vmem:[#allocation1 + $0x8] sm:$0xff pattern:$0x75316420]
      %1171 = vst [vmem:[%s251 + $0x10] sm:$0xf0] %v1167
      %1172 = vst [vmem:[%s251 + $0x18] sm:$0xf0] %v1168
      %p1173 = scmp.lt.s32.totalorder %s17, 1
      %s1174 = scalar_select %p1173, %s17, 1
      %s1175 = smul.addr %s1174, 4
      %s1176 = smul.addr %s1175, 8
      %s1177 = scalar_lea.vmem %s6, %s1176
      // Predicated region
      $region45: #{su_block_forward.1} parent=43 // pred_check
        %p1178 = pneg %p166
      $region46: #{su_block_forward.1} parent=43 // pred_check_branch
        %1180 = sbr.rel (%p1178) target = $region48
      $region47: #{su_block_forward.1} parent=43 // pred_region
        _
      $region48: #{su_block_forward.1} parent=43 // pred_fallthru
        _
    $region44: #{su_block_forward.1} parent=5 // pred_fallthru
      _
    %p1181 = scmp.le.s32.totalorder 2, %s12
    // Predicated region
    $region49: #{su_block_forward.1} parent=5 // pred_check
      %p1182 = pneg %p1181
    $region50: #{su_block_forward.1} parent=5 // pred_check_branch
      %1184 = sbr.rel (%p1182) target = $region52
    $region51: #{su_block_forward.1} parent=5 // pred_region
      %s1185 = ssub.s32 %s12, 2
      // Predicated region
      $region53: #{su_block_forward.1} parent=51 // pred_check
        %p1186 = pneg %p172
      $region54: #{su_block_forward.1} parent=51 // pred_check_branch
        %1188 = sbr.rel (%p1186) target = $region56
      $region55: #{su_block_forward.1} parent=51 // pred_region
        %p1189 = scmp.lt.s32.totalorder %s18, 1
        %s1190 = scalar_select %p1189, %s18, 1
        %s1191 = smul.addr %s1190, 4
        %s1192 = smul.addr %s1191, 8
        %s1193 = scalar_lea.vmem %s6, %s1192
      $region56: #{su_block_forward.1} parent=51 // pred_fallthru
        _
    $region52: #{su_block_forward.1} parent=5 // pred_fallthru
      _
  $region6: #{su_block_forward.1} parent=0 // loop_footer
    %s16 = sadd.s32 1, %s12
  $region7: #{su_block_forward.1} parent=0 // loop_footer_branch
    %11 = sbr.rel target = $region3
  $region8: #{su_block_forward.1} parent=0 // loop_exit
    _

</llo_original>
